<compile_context>
chip_gen: v5e
topology: v5e:2x2
jax: 0.10.0
libtpu: 0.0.40
codegen_flags: <defaults>
</compile_context>

<pallas_src>
import jax
import jax.numpy as jnp
from jax import lax
from jax.experimental import pallas as pl
from jax.experimental.pallas import tpu as pltpu


def _sequential_lsh_kernel(x_ref, w_ref, o_ref):
    # o_ref block index is constant over the D axis -> it stays VMEM-resident
    # and serves as the f32 accumulator; zero it on the first D step.
    @pl.when(pl.program_id(1) == 0)
    def _():
        o_ref[...] = jnp.zeros_like(o_ref)

    # Folded matvec partial: (1, td) x (tb, td) contracting D -> (1, tb),
    # lane-dense (batch on lanes), f32 accumulation on the MXU.
    o_ref[...] += lax.dot_general(
        w_ref[...], x_ref[...],
        dimension_numbers=(((1,), (1,)), ((), ())),
        preferred_element_type=jnp.float32,
    )


def _round_up(n, m):
    return (n + m - 1) // m * m


def sequential_lsh(x, weights, agg_weights, *, tile_b=1024, tile_d=2048,
                   compute_dtype=jnp.bfloat16):
    """x: (B, D), weights: (K, D), agg_weights: (K,) -> (B,) float32."""
    B, D = x.shape
    K, D2 = weights.shape
    assert D == D2 and agg_weights.shape == (K,)

    LANE = 128

    # Algebraic fold of the two linear layers, done once in f32.
    w_comb = jnp.dot(agg_weights.astype(jnp.float32),
                     weights.astype(jnp.float32))            # (D,)

    # --- tiling: lane-granule (128) multiples everywhere -----------------
    td = max(LANE, min(_round_up(tile_d, LANE), _round_up(D, LANE)))
    nd = pl.cdiv(D, td)
    D_pad = nd * td

    tb = max(LANE, min(_round_up(tile_b, LANE), _round_up(B, LANE)))
    # v7x has 2 TensorCores sharded over the "parallel" B axis: keep >= 2
    # B tiles whenever B allows it so neither core idles.
    if _round_up(B, LANE) <= tb and _round_up(B, LANE) >= 2 * LANE:
        tb = _round_up(_round_up(B, LANE) // 2, LANE)
    nb = pl.cdiv(B, tb)
    B_pad = nb * tb

    # --- cast + zero-pad (pads contribute nothing to the D reduction) ----
    xc = x.astype(compute_dtype)
    wc = w_comb.astype(compute_dtype).reshape(1, D)
    if (B_pad, D_pad) != (B, D):
        xc = jnp.pad(xc, ((0, B_pad - B), (0, D_pad - D)))
    if D_pad != D:
        wc = jnp.pad(wc, ((0, 0), (0, D_pad - D)))

    itemsize = jnp.dtype(compute_dtype).itemsize
    # x double-buffered + weight block + resident f32 output block.
    vmem_est = 2 * tb * td * itemsize + 2 * td * itemsize + tb * 4
    vmem_limit = int(min(48 << 20, max(32 << 20, 2 * vmem_est)))

    cost = pl.CostEstimate(
        flops=2 * B_pad * D_pad,
        transcendentals=0,
        bytes_accessed=(B_pad * D_pad * itemsize     # x stream
                        + nb * D_pad * itemsize      # folded weights per B tile
                        + B_pad * 4),                # output
    )

    out = pl.pallas_call(
        _sequential_lsh_kernel,
        out_shape=jax.ShapeDtypeStruct((1, B_pad), jnp.float32),
        grid_spec=pltpu.PrefetchScalarGridSpec(
            num_scalar_prefetch=0,
            grid=(nb, nd),                                     # reduction last
            in_specs=[
                pl.BlockSpec((tb, td), lambda i, k: (i, k)),   # x tile
                pl.BlockSpec((1, td), lambda i, k: (0, k)),    # folded weights
            ],
            out_specs=pl.BlockSpec((1, tb), lambda i, k: (0, i)),
        ),
        compiler_params=pltpu.CompilerParams(
            dimension_semantics=("parallel", "arbitrary"),
            vmem_limit_bytes=vmem_limit,
        ),
        cost_estimate=cost,
    )(xc, wc)

    return out[0, :B]


# TODO(synk): SequentialLSH.forward's length-mismatch branch
# (prev.output_length != next.input_length -> chunking `old` into rows) has no
# clean vectorized equivalent; only the matched-length batched path is
# implemented here.


if __name__ == "__main__":
    # Two-layer SequentialLSH: D=32 -> K=4 hashes -> 1 (flattened), batch of 8.
    # At this size wall time is pure launch/DMA-setup overhead; the tiling only
    # engages at production sizes (B, D >= 1024).
    batch = 8
    input_length = 32
    num_components = 4
    scale = 1.0

    key = jax.random.PRNGKey(0)
    k_x, k_w, k_a = jax.random.split(key, 3)

    # Deterministic parameter init matching torch.rand(...)*(2*scale) - scale.
    weights = (
        jax.random.uniform(k_w, (num_components, input_length), jnp.float32)
        * (2.0 * scale) - scale
    )
    agg_weights = (
        jax.random.uniform(k_a, (num_components,), jnp.float32)
        * (2.0 * scale) - scale
    )
    x = jax.random.normal(k_x, (batch, input_length), jnp.float32)

    # Strict f32 two-layer reference of the sequential forward.
    ref = (x @ weights.T) @ agg_weights

    # f32 kernel path: matches the module's f32 numerics tightly.
    out_f32 = jax.block_until_ready(
        sequential_lsh(x, weights, agg_weights, compute_dtype=jnp.float32))
    assert out_f32.shape == (batch,)
    assert jnp.allclose(out_f32, ref, atol=1e-5, rtol=1e-5)

    # Default production path: bf16 x/w stream, f32 accumulation.
    out_bf16 = jax.block_until_ready(sequential_lsh(x, weights, agg_weights))
    assert out_bf16.shape == (batch,)
    assert jnp.allclose(out_bf16, ref, atol=1e-1, rtol=5e-2)

    print("KERNEL_OK")
</pallas_src>

<mosaic_0001>
module attributes {stable_mosaic.version = 11 : i64} {
  func.func @_sequential_lsh_kernel(%arg0: i32, %arg1: i32, %arg2: memref<128x128xf32, #tpu.memory_space<vmem>>, %arg3: memref<1x128xf32, #tpu.memory_space<vmem>>, %arg4: memref<1x128xf32, #tpu.memory_space<vmem>>) attributes {dimension_semantics = [#tpu.dimension_semantics<parallel>, #tpu.dimension_semantics<arbitrary>], iteration_bounds = array<i64: 1, 1>, scalar_prefetch = 0 : i64, scratch_operands = 0 : i64, tpu.core_type = #tpu.core_type<tc>, window_params = [{transform_indices = @transform_0, window_bounds = array<i64: 128, 128>}, {transform_indices = @transform_1, window_bounds = array<i64: 1, 128>}, {transform_indices = @transform_2, window_bounds = array<i64: 1, 128>}]} {
    %c0_i32 = arith.constant 0 : i32
    %0 = arith.cmpi eq, %arg1, %c0_i32 : i32
    %1 = arith.extui %0 : i1 to i32
    %c0_i32_0 = arith.constant 0 : i32
    %2 = arith.cmpi ne, %1, %c0_i32_0 : i32
    scf.if %2 {
      %cst_8 = arith.constant 0.000000e+00 : f32
      %9 = vector.broadcast %cst_8 : f32 to vector<1x128xf32>
      %c0_9 = arith.constant 0 : index
      %c0_10 = arith.constant 0 : index
      %10 = vector.load %arg4[%c0_9, %c0_10] : memref<1x128xf32, #tpu.memory_space<vmem>>, vector<1x128xf32>
      tpu.vector_store %arg4[%c0_9, %c0_10], %9 {strides = array<i32>} : memref<1x128xf32, #tpu.memory_space<vmem>>, vector<1x128xf32>,
    } else {
    }
    %c0 = arith.constant 0 : index
    %c0_1 = arith.constant 0 : index
    %3 = vector.load %arg4[%c0, %c0_1] : memref<1x128xf32, #tpu.memory_space<vmem>>, vector<1x128xf32>
    %c0_2 = arith.constant 0 : index
    %c0_3 = arith.constant 0 : index
    %4 = vector.load %arg3[%c0_2, %c0_3] : memref<1x128xf32, #tpu.memory_space<vmem>>, vector<1x128xf32>
    %c0_4 = arith.constant 0 : index
    %c0_5 = arith.constant 0 : index
    %5 = vector.load %arg2[%c0_4, %c0_5] : memref<128x128xf32, #tpu.memory_space<vmem>>, vector<128x128xf32>
    %cst = arith.constant dense<0.000000e+00> : vector<1x128xf32>
    %6 = tpu.matmul %4, %5, %cst {dimension_numbers = #tpu.dot_dimension_numbers<[1], [1], [0], [0], [0, 0, 1, 0], [], []>} : vector<1x128xf32>, vector<128x128xf32>, vector<1x128xf32> -> vector<1x128xf32>
    %7 = arith.addf %3, %6 : vector<1x128xf32>
    %c0_6 = arith.constant 0 : index
    %c0_7 = arith.constant 0 : index
    %8 = vector.load %arg4[%c0_6, %c0_7] : memref<1x128xf32, #tpu.memory_space<vmem>>, vector<1x128xf32>
    tpu.vector_store %arg4[%c0_6, %c0_7], %7 {strides = array<i32>} : memref<1x128xf32, #tpu.memory_space<vmem>>, vector<1x128xf32>,
    return
  }
  func.func @transform_0(%arg0: i32, %arg1: i32) -> (i32, i32) {
    %c0_i32 = arith.constant 0 : i32
    return %arg0, %arg1 : i32, i32
  }
  func.func @transform_1(%arg0: i32, %arg1: i32) -> (i32, i32) {
    %c0_i32 = arith.constant 0 : i32
    %c0_i32_0 = arith.constant 0 : i32
    return %c0_i32, %arg1 : i32, i32
  }
  func.func @transform_2(%arg0: i32, %arg1: i32) -> (i32, i32) {
    %c0_i32 = arith.constant 0 : i32
    %c0_i32_0 = arith.constant 0 : i32
    return %c0_i32, %arg0 : i32, i32
  }
}

</mosaic_0001>

<llo_original>
// kernel: tpu_custom_call.1
$region0: #{tpu_custom_call.1}
  #allocation0 [shape = 'u32[]', space=smem, size = 0x4, offset = 0x4, fixed_abs, tag = 'smem constant byte address 0x4 - core index']
  #allocation1 [shape = 'u32[72,128]{1,0:T(1,128)}', space=vmem, size = 0x9000, scoped, tag = 'internal scratch']
  %s0 = inlined_call_operand.hbm [shape: f32[128,128], index: 0, kind: input, shape index: {}]
  %s1 = inlined_call_operand.hbm [shape: f32[1,128], index: 1, kind: input, shape index: {}]
  %s2 = inlined_call_operand.hbm [shape: f32[1,128], index: 2, kind: output, shape index: {}]
  %s3 = sld [smem:[#allocation0]]
  $region30: #{tpu_custom_call.1} parent=0
    _
  %s5 = ssub.s32 1, %s3
  %s6 = scalar_select 0, %s5, %s3
  $region1: #{tpu_custom_call.1} parent=0
    #allocation2 [shape = 'u8[65536]{0}', space=vmem, size = 0x10000, scoped, tag = 'input window, operand 0, single buffered']
    #allocation3 [shape = 's32[1]{0}', space=sflag, size = 0x4, scoped, tag = 'scoped memory for tpu_custom_call.1']
    #allocation4 [shape = 's32[1]{0}', space=sflag, size = 0x4, scoped, tag = 'scoped memory for tpu_custom_call.1']
    #allocation5 [shape = 'u8[512]{0}', space=vmem, size = 0x400, scoped, tag = 'input window, operand 1, single buffered']
    #allocation6 [shape = 's32[1]{0}', space=sflag, size = 0x4, scoped, tag = 'scoped memory for tpu_custom_call.1']
    #allocation7 [shape = 'u8[512]{0}', space=vmem, size = 0x400, scoped, tag = 'output window, operand 0, single buffered']
    %7 = vsyncpa [#allocation3], 0
    %8 = vsyncpa [#allocation6], 0
    %9 = vsyncpa [#allocation4], 0
    // Predicated region
    $region2: #{tpu_custom_call.1} parent=1 // pred_check
      _
    $region3: #{tpu_custom_call.1} parent=1 // pred_check_branch
      %11 = sbr.rel (0) target = $region5
    $region4: #{tpu_custom_call.1} parent=1 // pred_region
      %13 = vsyncadd [#allocation3], 0
      %s14 = sshll.u32 %s0, 4
      %s15 = int_to_ptr.hbm [resolvable:$true] %s14
      %s16 = sshll.u32 [#allocation2], 4
      %s17 = int_to_ptr.vmem [resolvable:$true] %s16
      %22 = dma.hbm_to_vmem [thread:$0]  %s15, 2048, %s17, [#allocation3], 128, 128, 8
    $region5: #{tpu_custom_call.1} parent=1 // pred_fallthru
      _
    // Predicated region
    $region6: #{tpu_custom_call.1} parent=1 // pred_check
      _
    $region7: #{tpu_custom_call.1} parent=1 // pred_check_branch
      %24 = sbr.rel (0) target = $region9
    $region8: #{tpu_custom_call.1} parent=1 // pred_region
      %26 = vsyncadd [#allocation6], 0
      %s28 = sshll.u32 %s1, 4
      %s29 = int_to_ptr.hbm [resolvable:$true] %s28
      %s30 = sshll.u32 [#allocation5], 4
      %s31 = int_to_ptr.vmem [resolvable:$true] %s30
      %33 = dma.hbm_to_vmem [thread:$0]  %s29, 16, %s31, [#allocation6]
    $region9: #{tpu_custom_call.1} parent=1 // pred_fallthru
      _
    // Predicated region
    $region10: #{tpu_custom_call.1} parent=1 // pred_check
      _
    $region11: #{tpu_custom_call.1} parent=1 // pred_check_branch
      %35 = sbr.rel (0) target = $region13
    $region12: #{tpu_custom_call.1} parent=1 // pred_region
      %37 = dma.done [#allocation3], 2048
    $region13: #{tpu_custom_call.1} parent=1 // pred_fallthru
      _
    // Predicated region
    $region14: #{tpu_custom_call.1} parent=1 // pred_check
      _
    $region15: #{tpu_custom_call.1} parent=1 // pred_check_branch
      %39 = sbr.rel (0) target = $region17
    $region16: #{tpu_custom_call.1} parent=1 // pred_region
      %41 = dma.done [#allocation6], 16
    $region17: #{tpu_custom_call.1} parent=1 // pred_fallthru
      _
    %p42 = scmp.eq.s32.totalorder 0, 0
    // Predicated region
    $region18: #{tpu_custom_call.1} parent=1 // pred_check
      %p43 = pneg %p42
    $region19: #{tpu_custom_call.1} parent=1 // pred_check_branch
      %45 = sbr.rel (%p43) target = $region21
    $region20: #{tpu_custom_call.1} parent=1 // pred_region
      %46 = vst [vmem:[#allocation7] sm:$0x1] 0.0
    $region21: #{tpu_custom_call.1} parent=1 // pred_fallthru
      _
    %v47 = vld [vmem:[#allocation7] sm:$0x1]
    %v48 = vld [vmem:[#allocation5] sm:$0x1]
    %v49 = vld [vmem:[#allocation2] sm:$0xff]
    %v50 = vld [vmem:[#allocation2 + $0x8] sm:$0xff]
    %v51 = vld [vmem:[#allocation2 + $0x10] sm:$0xff]
    %v52 = vld [vmem:[#allocation2 + $0x18] sm:$0xff]
    %v53 = vld [vmem:[#allocation2 + $0x20] sm:$0xff]
    %v54 = vld [vmem:[#allocation2 + $0x28] sm:$0xff]
    %v55 = vld [vmem:[#allocation2 + $0x30] sm:$0xff]
    %v56 = vld [vmem:[#allocation2 + $0x38] sm:$0xff]
    %v57 = vld [vmem:[#allocation2 + $0x40] sm:$0xff]
    %v58 = vld [vmem:[#allocation2 + $0x48] sm:$0xff]
    %v59 = vld [vmem:[#allocation2 + $0x50] sm:$0xff]
    %v60 = vld [vmem:[#allocation2 + $0x58] sm:$0xff]
    %v61 = vld [vmem:[#allocation2 + $0x60] sm:$0xff]
    %v62 = vld [vmem:[#allocation2 + $0x68] sm:$0xff]
    %v63 = vld [vmem:[#allocation2 + $0x70] sm:$0xff]
    %v64 = vld [vmem:[#allocation2 + $0x78] sm:$0xff]
    %65 = vmatpush.xpose.msra.mxu0 %v64
    %66 = vmatpush.xpose.msra.mxu0 %v63
    %67 = vmatpush.xpose.msra.mxu0 %v62
    %68 = vmatpush.xpose.msra.mxu0 %v61
    %69 = vmatpush.xpose.msra.mxu0 %v60
    %70 = vmatpush.xpose.msra.mxu0 %v59
    %71 = vmatpush.xpose.msra.mxu0 %v58
    %72 = vmatpush.xpose.msra.mxu0 %v57
    %73 = vmatpush.xpose.msra.mxu0 %v56
    %74 = vmatpush.xpose.msra.mxu0 %v55
    %75 = vmatpush.xpose.msra.mxu0 %v54
    %76 = vmatpush.xpose.msra.mxu0 %v53
    %77 = vmatpush.xpose.msra.mxu0 %v52
    %78 = vmatpush.xpose.msra.mxu0 %v51
    %79 = vmatpush.xpose.msra.mxu0 %v50
    %80 = vmatpush.xpose.msra.mxu0 %v49
    %81 = vmatmul.f32.gmra.mxu0 %v48
    %v82 = vpop.f32.mrf.mxu0
    %v83 = vadd.f32 0.0, %v82
    %84 = vdwg.mxu0
    %v85 = vadd.f32 %v47, %v83
    %86 = vst [vmem:[#allocation7] sm:$0x1] %v85
    // Predicated region
    $region22: #{tpu_custom_call.1} parent=1 // pred_check
      _
    $region23: #{tpu_custom_call.1} parent=1 // pred_check_branch
      %88 = sbr.rel (0) target = $region25
    $region24: #{tpu_custom_call.1} parent=1 // pred_region
      %90 = vsyncadd [#allocation4], 0
      %s92 = sshll.u32 [#allocation7], 4
      %s93 = int_to_ptr.vmem [resolvable:$true] %s92
      %s94 = sshll.u32 %s2, 4
      %s95 = int_to_ptr.hbm [resolvable:$true] %s94
      %97 = dma.vmem_to_hbm [thread:$0]  %s93, 16, %s95, [#allocation4]
    $region25: #{tpu_custom_call.1} parent=1 // pred_fallthru
      _
    // Predicated region
    $region26: #{tpu_custom_call.1} parent=1 // pred_check
      _
    $region27: #{tpu_custom_call.1} parent=1 // pred_check_branch
      %99 = sbr.rel (0) target = $region29
    $region28: #{tpu_custom_call.1} parent=1 // pred_region
      %101 = dma.done [#allocation4], 16
    $region29: #{tpu_custom_call.1} parent=1 // pred_fallthru
      _
    %102 = vsyncpa [#allocation3], 1
    %103 = vsyncpa [#allocation6], 1
    %104 = vsyncpa [#allocation4], 1

</llo_original>
